<compile_context>
chip_gen: v6e
topology: v6e:2x2x1
jax: 0.10.0
libtpu: 0.0.40
codegen_flags: <defaults>
</compile_context>

<pallas_src>
import jax
import jax.numpy as jnp
from jax.experimental import pallas as pl
from jax.experimental.pallas import tpu as pltpu


def _double_kernel(x_ref, o_ref):
    # Hot path: elementwise foo + foo on the VPU. 1 HBM read + 1 HBM write per
    # element; the add itself is free filler under the DMA.
    x = x_ref[...]
    o_ref[...] = x + x


def _sublane_multiple(dtype) -> int:
    """Minimum sublane tile for the dtype (packed dtypes pack along sublanes)."""
    itemsize = jnp.dtype(dtype).itemsize
    if itemsize >= 4:
        return 8
    if itemsize == 2:
        return 16
    return 32


def _choose_cols(n: int):
    """Widest lane-dense column count (multiple of 128) that divides n."""
    for c in (8192, 4096, 2048, 1024, 512, 256, 128):
        if n % c == 0:
            return c
    return None


def module4_forward(foo: jax.Array, *, target_block_bytes: int = 4 << 20) -> jax.Array:
    """Pallas implementation of Module4.forward: returns foo + foo."""
    orig_shape = foo.shape
    dtype = foo.dtype
    n = foo.size
    itemsize = jnp.dtype(dtype).itemsize

    cols = _choose_cols(n)
    if cols is None or n < 1024:
        # Tiny input (< one vreg of work) or flattened size not a multiple of
        # 128 lanes: a plain XLA add is already optimal for this mem-bound op.
        return foo + foo

    rows = n // cols
    # Free (view-level) reshape for a contiguous array -> no extra HBM pass.
    x2d = foo.reshape(rows, cols)

    sub = _sublane_multiple(dtype)
    row_bytes = cols * itemsize
    # Rows per block targeting ~target_block_bytes, rounded down to a multiple
    # of the dtype's sublane tile.
    block_rows = max(sub, (target_block_bytes // row_bytes) // sub * sub)

    if block_rows >= rows:
        # Whole array fits in one block (block_shape == full array dims).
        block_rows = rows
        grid = (1,)
    else:
        # Ragged last block (rows % block_rows != 0) is masked by Pallas.
        grid = (pl.cdiv(rows, block_rows),)

    out2d = pl.pallas_call(
        _double_kernel,
        out_shape=jax.ShapeDtypeStruct((rows, cols), dtype),
        grid_spec=pltpu.PrefetchScalarGridSpec(
            num_scalar_prefetch=0,
            grid=grid,
            in_specs=[pl.BlockSpec((block_rows, cols), lambda i: (i, 0))],
            out_specs=pl.BlockSpec((block_rows, cols), lambda i: (i, 0)),
        ),
        compiler_params=pltpu.CompilerParams(
            dimension_semantics=("parallel",),
            vmem_limit_bytes=32 * 1024 * 1024,
        ),
    )(x2d)

    return out2d.reshape(orig_shape)


if __name__ == "__main__":
    key = jax.random.PRNGKey(0)
    k1, k2 = jax.random.split(key)

    # Small NCHW-like input consistent with Module4's generic elementwise forward.
    foo = jax.random.normal(k1, (2, 4, 16, 16), dtype=jnp.float32)
    out = module4_forward(foo)
    jax.block_until_ready(out)
    expected = foo + foo
    assert out.shape == expected.shape, (out.shape, expected.shape)
    assert out.dtype == expected.dtype, (out.dtype, expected.dtype)
    assert bool(jnp.allclose(out, expected, atol=1e-6, rtol=1e-6))

    # Second input exercises the multi-step grid, dtype-aware (16,128) bf16
    # tiling and the masked ragged tail block (small target block forces >1
    # grid step).
    foo2 = jax.random.normal(k2, (6, 4, 64, 160), dtype=jnp.bfloat16)
    out2 = module4_forward(foo2, target_block_bytes=256 * 1024)
    jax.block_until_ready(out2)
    expected2 = foo2 + foo2
    assert out2.shape == expected2.shape
    assert out2.dtype == expected2.dtype
    assert bool(jnp.array_equal(out2, expected2))

    print("KERNEL_OK")
</pallas_src>

<mosaic_0001>
module attributes {stable_mosaic.version = 11 : i64} {
  func.func @_double_kernel(%arg0: i32, %arg1: memref<1x2048xf32, #tpu.memory_space<vmem>>, %arg2: memref<1x2048xf32, #tpu.memory_space<vmem>>) attributes {dimension_semantics = [#tpu.dimension_semantics<parallel>], iteration_bounds = array<i64: 1>, scalar_prefetch = 0 : i64, scratch_operands = 0 : i64, tpu.core_type = #tpu.core_type<tc>, window_params = [{transform_indices = @transform_0, window_bounds = array<i64: 1, 2048>}, {transform_indices = @transform_1, window_bounds = array<i64: 1, 2048>}]} {
    %c0 = arith.constant 0 : index
    %c0_0 = arith.constant 0 : index
    %0 = vector.load %arg1[%c0, %c0_0] : memref<1x2048xf32, #tpu.memory_space<vmem>>, vector<1x2048xf32>
    %1 = arith.addf %0, %0 : vector<1x2048xf32>
    %c0_1 = arith.constant 0 : index
    %c0_2 = arith.constant 0 : index
    %2 = vector.load %arg2[%c0_1, %c0_2] : memref<1x2048xf32, #tpu.memory_space<vmem>>, vector<1x2048xf32>
    tpu.vector_store %arg2[%c0_1, %c0_2], %1 {strides = array<i32>} : memref<1x2048xf32, #tpu.memory_space<vmem>>, vector<1x2048xf32>,
    return
  }
  func.func @transform_0(%arg0: i32) -> (i32, i32) {
    %c0_i32 = arith.constant 0 : i32
    %c0_i32_0 = arith.constant 0 : i32
    return %arg0, %c0_i32 : i32, i32
  }
  func.func @transform_1(%arg0: i32) -> (i32, i32) {
    %c0_i32 = arith.constant 0 : i32
    %c0_i32_0 = arith.constant 0 : i32
    return %arg0, %c0_i32 : i32, i32
  }
}

</mosaic_0001>

<llo_original>
// kernel: tpu_custom_call.1
$region0: #{tpu_custom_call.1}
  #allocation0 [shape = 'u32[]', space=smem, size = 0x4, offset = 0x4, fixed_abs, tag = 'smem constant byte address 0x4 - core index']
  #allocation1 [shape = 'u32[144,128]{1,0:T(1,128)}', space=vmem, size = 0x12000, scoped, tag = 'internal scratch']
  %s0 = inlined_call_operand.hbm [shape: f32[1,2048], index: 0, kind: input, shape index: {}]
  %s1 = inlined_call_operand.hbm [shape: f32[1,2048], index: 1, kind: output, shape index: {}]
  %s2 = sld [smem:[#allocation0]]
  $region18: #{tpu_custom_call.1} parent=0
    _
  %s4 = ssub.s32 1, %s2
  %s5 = scalar_select 0, %s4, %s2
  $region1: #{tpu_custom_call.1} parent=0
    #allocation2 [shape = 'u8[8192]{0}', space=vmem, size = 0x2000, scoped, tag = 'input window, operand 0, single buffered']
    #allocation3 [shape = 's32[1]{0}', space=sflag, size = 0x4, scoped, tag = 'scoped memory for tpu_custom_call.1']
    #allocation4 [shape = 's32[1]{0}', space=sflag, size = 0x4, scoped, tag = 'scoped memory for tpu_custom_call.1']
    #allocation5 [shape = 'u8[8192]{0}', space=vmem, size = 0x2000, scoped, tag = 'output window, operand 0, single buffered']
    %6 = vsyncpa [#allocation3], 0
    %7 = vsyncpa [#allocation4], 0
    // Predicated region
    $region2: #{tpu_custom_call.1} parent=1 // pred_check
      _
    $region3: #{tpu_custom_call.1} parent=1 // pred_check_branch
      %9 = sbr.rel (0) target = $region5
    $region4: #{tpu_custom_call.1} parent=1 // pred_region
      %s11 = ssub.s32 256, 256
      %12 = vsyncadd [#allocation3], %s11
      %s14 = sshll.u32 [#allocation2], 4
      %s15 = int_to_ptr.vmem [resolvable:$true] %s14
      %17 = dma.hbm_to_vmem [thread:$0]  %s0, 256, %s15, [#allocation3]
    $region5: #{tpu_custom_call.1} parent=1 // pred_fallthru
      _
    // Predicated region
    $region6: #{tpu_custom_call.1} parent=1 // pred_check
      _
    $region7: #{tpu_custom_call.1} parent=1 // pred_check_branch
      %19 = sbr.rel (0) target = $region9
    $region8: #{tpu_custom_call.1} parent=1 // pred_region
      %20 = dma.done [#allocation3], 256
    $region9: #{tpu_custom_call.1} parent=1 // pred_fallthru
      _
    %v21 = vld [vmem:[#allocation2] sm:$0xff]
    %v22 = vld [vmem:[#allocation2 + $0x8] sm:$0xff]
    %v23 = vadd.f32 %v21, %v21
    %v24 = vadd.f32 %v22, %v22
    %25 = vst [vmem:[#allocation5] sm:$0xff] %v23
    %26 = vst [vmem:[#allocation5 + $0x8] sm:$0xff] %v24
    // Predicated region
    $region10: #{tpu_custom_call.1} parent=1 // pred_check
      _
    $region11: #{tpu_custom_call.1} parent=1 // pred_check_branch
      %28 = sbr.rel (0) target = $region13
    $region12: #{tpu_custom_call.1} parent=1 // pred_region
      %s30 = ssub.s32 256, 256
      %31 = vsyncadd [#allocation4], %s30
      %s33 = sshll.u32 [#allocation5], 4
      %s34 = int_to_ptr.vmem [resolvable:$true] %s33
      %36 = dma.vmem_to_hbm [thread:$0]  %s34, 256, %s1, [#allocation4]
    $region13: #{tpu_custom_call.1} parent=1 // pred_fallthru
      _
    // Predicated region
    $region14: #{tpu_custom_call.1} parent=1 // pred_check
      _
    $region15: #{tpu_custom_call.1} parent=1 // pred_check_branch
      %38 = sbr.rel (0) target = $region17
    $region16: #{tpu_custom_call.1} parent=1 // pred_region
      %39 = dma.done [#allocation4], 256
    $region17: #{tpu_custom_call.1} parent=1 // pred_fallthru
      _
    %40 = vsyncpa [#allocation3], 1
    %41 = vsyncpa [#allocation4], 1

</llo_original>
